<compile_context>
chip_gen: v7x
topology: tpu7x:2x2x1
jax: 0.10.0
libtpu: 0.0.40
codegen_flags: <defaults>
</compile_context>

<pallas_src>
import functools

import jax
import jax.numpy as jnp
from jax.experimental import pallas as pl
from jax.experimental.pallas import tpu as pltpu


LANE = 128                       # lane width: last dim of every block
TILE_M = 512                     # dst-row tile (tiled aggregation path)
TILE_K = 512                     # src / reduction tile (tiled path)
AGG_DTYPE = jnp.bfloat16         # A and projected features in the N^2 matmul
VMEM_LIMIT = 48 * 1024 * 1024    # explicit budget (v7x has 64 MiB/TC)
FUSED_MAX_BYTES = 20 * 1024 * 1024  # above this, use the tiled path


def _round_up(x, m):
    return (x + m - 1) // m * m


def _pad2d(a, rows, cols):
    return jnp.pad(a, ((0, rows - a.shape[0]), (0, cols - a.shape[1])))


# ----------------------------------------------------------------------------
# Glue: dense mean-normalized adjacency from edge_index (COO, [2, E]).
# edge_index[0] = src, edge_index[1] = dst; messages x[src] averaged into dst.
# Zero in-degree nodes aggregate to 0 (matches PyG scatter-mean).
# ----------------------------------------------------------------------------
def build_mean_adjacency(edge_index, num_nodes, n_pad, dtype):
    src = edge_index[0]
    dst = edge_index[1]
    adj = jnp.zeros((n_pad, n_pad), jnp.float32).at[dst, src].add(1.0)
    deg = jnp.sum(adj, axis=1, keepdims=True)
    adj = adj / jnp.maximum(deg, 1.0)        # normalize in f32, then cast
    return adj.astype(dtype)


# ----------------------------------------------------------------------------
# Fused small-graph path: the whole multi-layer forward in one pallas_call.
# ----------------------------------------------------------------------------
def _make_fused_kernel(num_layers):
    def kernel(a_ref, x_ref, *refs):
        o_ref = refs[-1]
        w_refs = refs[:-1]
        a = a_ref[...]                               # (Np, Np)   bf16
        h = x_ref[...]                               # (Np, F0p)  f32
        for li in range(num_layers):
            wl = w_refs[3 * li][...]
            wr = w_refs[3 * li + 1][...]
            b = w_refs[3 * li + 2][...]
            # reassociated: A @ (H W_l) + (H W_r + b)
            hwl = jnp.dot(h, wl, preferred_element_type=jnp.float32)
            root = jnp.dot(h, wr, preferred_element_type=jnp.float32) + b
            h = jnp.dot(a, hwl.astype(a.dtype),
                        preferred_element_type=jnp.float32) + root
            if li < num_layers - 1:
                h = jnp.maximum(h, 0.0)              # relu; dropout = identity
        o_ref[...] = h
    return kernel


def _sage_fused(a_pad, x_pad, padded_params):
    n_pad = x_pad.shape[0]
    f_out_pad = padded_params[-1][0].shape[1]
    num_layers = len(padded_params)

    flat = []
    in_specs = [
        pl.BlockSpec(a_pad.shape, lambda: (0, 0)),
        pl.BlockSpec(x_pad.shape, lambda: (0, 0)),
    ]
    flops = 0
    bytes_accessed = (a_pad.size * a_pad.dtype.itemsize
                      + x_pad.size * 4 + n_pad * f_out_pad * 4)
    for (wl_p, wr_p, b_p) in padded_params:
        fi, fo = wl_p.shape
        flops += 2 * n_pad * n_pad * fo + 4 * n_pad * fi * fo
        bytes_accessed += (wl_p.size + wr_p.size + b_p.size) * 4
        for t in (wl_p, wr_p, b_p):
            flat.append(t)
            in_specs.append(pl.BlockSpec(t.shape, lambda: (0, 0)))

    return pl.pallas_call(
        _make_fused_kernel(num_layers),
        out_shape=jax.ShapeDtypeStruct((n_pad, f_out_pad), jnp.float32),
        in_specs=in_specs,
        out_specs=pl.BlockSpec((n_pad, f_out_pad), lambda: (0, 0)),
        compiler_params=pltpu.CompilerParams(vmem_limit_bytes=VMEM_LIMIT),
        cost_estimate=pl.CostEstimate(flops=flops, transcendentals=0,
                                      bytes_accessed=bytes_accessed),
    )(a_pad, x_pad, *flat)


# ----------------------------------------------------------------------------
# Tiled large-graph path.
# Projection kernel: HW_l = H @ W_l (stored bf16), root = H @ W_r + b (f32).
# ----------------------------------------------------------------------------
def _project_kernel(x_ref, wl_ref, wr_ref, b_ref, hwl_ref, root_ref):
    x = x_ref[...]
    hwl_ref[...] = jnp.dot(x, wl_ref[...],
                           preferred_element_type=jnp.float32).astype(hwl_ref.dtype)
    root_ref[...] = jnp.dot(x, wr_ref[...],
                            preferred_element_type=jnp.float32) + b_ref[...]


def _project(x_pad, wl_p, wr_p, b_p):
    n_pad, f_in_pad = x_pad.shape
    f_out_pad = wl_p.shape[1]
    tm = min(TILE_M, n_pad)
    grid = (n_pad // tm,)
    flops = 4 * n_pad * f_in_pad * f_out_pad
    bytes_accessed = (x_pad.size * 4 + (wl_p.size + wr_p.size + b_p.size) * 4
                      + n_pad * f_out_pad * (AGG_DTYPE(0).dtype.itemsize + 4))
    return pl.pallas_call(
        _project_kernel,
        out_shape=(jax.ShapeDtypeStruct((n_pad, f_out_pad), AGG_DTYPE),
                   jax.ShapeDtypeStruct((n_pad, f_out_pad), jnp.float32)),
        grid=grid,
        in_specs=[
            pl.BlockSpec((tm, f_in_pad), lambda i: (i, 0)),
            pl.BlockSpec((f_in_pad, f_out_pad), lambda i: (0, 0)),
            pl.BlockSpec((f_in_pad, f_out_pad), lambda i: (0, 0)),
            pl.BlockSpec((1, f_out_pad), lambda i: (0, 0)),
        ],
        out_specs=(pl.BlockSpec((tm, f_out_pad), lambda i: (i, 0)),
                   pl.BlockSpec((tm, f_out_pad), lambda i: (i, 0))),
        compiler_params=pltpu.CompilerParams(
            dimension_semantics=("parallel",),
            vmem_limit_bytes=VMEM_LIMIT),
        cost_estimate=pl.CostEstimate(flops=flops, transcendentals=0,
                                      bytes_accessed=bytes_accessed),
    )(x_pad, wl_p, wr_p, b_p)


# Aggregation kernel: out[i-tile] = relu?( sum_k A[i,k] @ HWl[k] + root[i] )
def _aggregate_kernel(a_ref, hwl_ref, root_ref, o_ref, acc_ref, *, apply_relu):
    k = pl.program_id(1)

    @pl.when(k == 0)
    def _():
        acc_ref[...] = root_ref[...]         # root/self term seeds the accumulator

    acc_ref[...] += jnp.dot(a_ref[...], hwl_ref[...],
                            preferred_element_type=jnp.float32)

    @pl.when(k == pl.num_programs(1) - 1)
    def _():
        out = acc_ref[...]
        if apply_relu:
            out = jnp.maximum(out, 0.0)
        o_ref[...] = out


def _aggregate(a_pad, hwl, root, apply_relu):
    n_pad = a_pad.shape[0]
    f_out_pad = hwl.shape[1]
    tm = min(TILE_M, n_pad)
    tk = min(TILE_K, n_pad)
    grid = (n_pad // tm, n_pad // tk)
    flops = 2 * n_pad * n_pad * f_out_pad
    bytes_accessed = (a_pad.size * a_pad.dtype.itemsize
                      + hwl.size * hwl.dtype.itemsize * grid[0]
                      + root.size * 4 + n_pad * f_out_pad * 4)
    kernel = functools.partial(_aggregate_kernel, apply_relu=apply_relu)
    return pl.pallas_call(
        kernel,
        out_shape=jax.ShapeDtypeStruct((n_pad, f_out_pad), jnp.float32),
        grid=grid,
        in_specs=[
            pl.BlockSpec((tm, tk), lambda i, k: (i, k)),
            pl.BlockSpec((tk, f_out_pad), lambda i, k: (k, 0)),
            pl.BlockSpec((tm, f_out_pad), lambda i, k: (i, 0)),
        ],
        out_specs=pl.BlockSpec((tm, f_out_pad), lambda i, k: (i, 0)),
        scratch_shapes=[pltpu.VMEM((tm, f_out_pad), jnp.float32)],
        compiler_params=pltpu.CompilerParams(
            dimension_semantics=("parallel", "arbitrary"),
            vmem_limit_bytes=VMEM_LIMIT),
        cost_estimate=pl.CostEstimate(flops=flops, transcendentals=0,
                                      bytes_accessed=bytes_accessed),
    )(a_pad, hwl, root)


# ----------------------------------------------------------------------------
# SAGE model: parameter init + forward.
# ----------------------------------------------------------------------------
def init_sage_params(key, in_channels, hidden_channels, out_channels, num_layers=2):
    dims = [in_channels] + [hidden_channels] * (num_layers - 1) + [out_channels]
    params = []
    for li in range(num_layers):
        f_in, f_out = dims[li], dims[li + 1]
        key, k1, k2, k3 = jax.random.split(key, 4)
        scale = 1.0 / jnp.sqrt(jnp.float32(f_in))
        w_l = jax.random.uniform(k1, (f_in, f_out), jnp.float32, -scale, scale)
        w_r = jax.random.uniform(k2, (f_in, f_out), jnp.float32, -scale, scale)
        b_l = jax.random.uniform(k3, (f_out,), jnp.float32, -scale, scale)
        params.append((w_l, w_r, b_l))
    return params


def sage_forward(params, x, edge_index, path="auto"):
    n, f0 = x.shape
    num_layers = len(params)
    f_out = params[-1][0].shape[1]

    # padded (lane=128) feature dims at every layer boundary
    dims = [f0] + [p[0].shape[1] for p in params]
    dims_pad = [_round_up(d, LANE) for d in dims]

    # choose fused (everything VMEM-resident, one launch) vs tiled path
    n_pad_small = _round_up(n, LANE)
    fused_bytes = (n_pad_small * n_pad_small * 2
                   + 3 * n_pad_small * max(dims_pad) * 4
                   + sum((2 * di * do + do) * 4
                         for di, do in zip(dims_pad[:-1], dims_pad[1:])))
    if path == "auto":
        use_fused = fused_bytes <= FUSED_MAX_BYTES
    else:
        use_fused = (path == "fused")

    n_pad = n_pad_small if use_fused else _round_up(n, max(TILE_M, TILE_K))

    a_pad = build_mean_adjacency(edge_index, n, n_pad, AGG_DTYPE)
    x_pad = jnp.pad(x.astype(jnp.float32),
                    ((0, n_pad - n), (0, dims_pad[0] - f0)))

    # zero-pad weights/bias so padded output lanes stay exactly zero
    padded_params = []
    for li, (w_l, w_r, b_l) in enumerate(params):
        fi_p, fo_p = dims_pad[li], dims_pad[li + 1]
        wl_p = _pad2d(w_l.astype(jnp.float32), fi_p, fo_p)
        wr_p = _pad2d(w_r.astype(jnp.float32), fi_p, fo_p)
        b_p = jnp.pad(b_l.astype(jnp.float32), (0, fo_p - b_l.shape[0]))
        padded_params.append((wl_p, wr_p, b_p.reshape(1, fo_p)))

    if use_fused:
        out_pad = _sage_fused(a_pad, x_pad, padded_params)
    else:
        h = x_pad
        for li, (wl_p, wr_p, b_p) in enumerate(padded_params):
            hwl, root = _project(h, wl_p, wr_p, b_p)
            h = _aggregate(a_pad, hwl, root, apply_relu=(li < num_layers - 1))
        out_pad = h

    return out_pad[:n, :f_out]


# Pure-JAX f32 reference (for validation only).
def sage_reference(params, x, edge_index):
    n = x.shape[0]
    src, dst = edge_index[0], edge_index[1]
    adj = jnp.zeros((n, n), jnp.float32).at[dst, src].add(1.0)
    adj = adj / jnp.maximum(adj.sum(axis=1, keepdims=True), 1.0)
    h = x.astype(jnp.float32)
    for li, (w_l, w_r, b_l) in enumerate(params):
        h = (adj @ h) @ w_l + h @ w_r + b_l
        if li < len(params) - 1:
            h = jnp.maximum(h, 0.0)
    return h


if __name__ == "__main__":
    forward = jax.jit(sage_forward, static_argnames=("path",))

    key = jax.random.PRNGKey(0)
    num_nodes, in_channels, hidden_channels, out_channels = 16, 8, 32, 16
    num_layers, num_edges = 2, 48

    k_feat, k_src, k_dst, k_params = jax.random.split(key, 4)
    x = jax.random.normal(k_feat, (num_nodes, in_channels), dtype=jnp.float32)
    src = jax.random.randint(k_src, (num_edges,), 0, num_nodes, dtype=jnp.int32)
    dst = jax.random.randint(k_dst, (num_edges,), 0, num_nodes, dtype=jnp.int32)
    edge_index = jnp.stack([src, dst], axis=0)
    params = init_sage_params(k_params, in_channels, hidden_channels,
                              out_channels, num_layers)

    # 1) small graph -> fully-fused single-kernel path
    out = jax.block_until_ready(forward(params, x, edge_index))
    assert out.shape == (num_nodes, out_channels), out.shape
    ref = sage_reference(params, x, edge_index)
    err = float(jnp.max(jnp.abs(out - ref)) / (jnp.max(jnp.abs(ref)) + 1e-6))
    assert err < 5e-2, f"fused path mismatch: rel err {err}"

    # 2) larger graph -> tiled grid + accumulator path
    n_big, e_big = 1300, 16 * 1300
    kb1, kb2, kb3, kb4 = jax.random.split(jax.random.PRNGKey(1), 4)
    xb = jax.random.normal(kb1, (n_big, in_channels), dtype=jnp.float32)
    srcb = jax.random.randint(kb2, (e_big,), 0, n_big, dtype=jnp.int32)
    dstb = jax.random.randint(kb3, (e_big,), 0, n_big, dtype=jnp.int32)
    eib = jnp.stack([srcb, dstb], axis=0)
    params_b = init_sage_params(kb4, in_channels, hidden_channels,
                                out_channels, num_layers)
    out_b = jax.block_until_ready(forward(params_b, xb, eib, path="tiled"))
    assert out_b.shape == (n_big, out_channels), out_b.shape
    ref_b = sage_reference(params_b, xb, eib)
    err_b = float(jnp.max(jnp.abs(out_b - ref_b)) / (jnp.max(jnp.abs(ref_b)) + 1e-6))
    assert err_b < 5e-2, f"tiled path mismatch: rel err {err_b}"

    print("KERNEL_OK")
</pallas_src>

<mosaic_0001>
module attributes {stable_mosaic.version = 11 : i64} {
  func.func private @main(%arg0: i32) attributes {dimension_semantics = [#tpu.dimension_semantics<core_parallel>], iteration_bounds = array<i64: 2>, tpu.core_type = #tpu.core_type<sc_scalar_subcore>, window_params = []} {
    return
  }
}

module attributes {stable_mosaic.version = 11 : i64} {
  func.func private @main(%arg0: i32) attributes {dimension_semantics = [#tpu.dimension_semantics<core_parallel>], iteration_bounds = array<i64: 2>, tpu.core_type = #tpu.core_type<sc_scalar_subcore>, window_params = []} {
    return
  }
}

module attributes {stable_mosaic.version = 11 : i64} {
  func.func @kernel(%arg0: memref<128x128xbf16, #tpu.memory_space<vmem>>, %arg1: memref<128x128xf32, #tpu.memory_space<vmem>>, %arg2: memref<128x128xf32, #tpu.memory_space<vmem>>, %arg3: memref<128x128xf32, #tpu.memory_space<vmem>>, %arg4: memref<1x128xf32, #tpu.memory_space<vmem>>, %arg5: memref<128x128xf32, #tpu.memory_space<vmem>>, %arg6: memref<128x128xf32, #tpu.memory_space<vmem>>, %arg7: memref<1x128xf32, #tpu.memory_space<vmem>>, %arg8: memref<128x128xf32, #tpu.memory_space<vmem>>) attributes {dimension_semantics = [], scalar_prefetch = 0 : i64, scratch_operands = 0 : i64, tpu.core_type = #tpu.core_type<tc>} {
    %c0 = arith.constant 0 : index
    %c0_0 = arith.constant 0 : index
    %0 = vector.load %arg0[%c0, %c0_0] : memref<128x128xbf16, #tpu.memory_space<vmem>>, vector<128x128xbf16>
    %c0_1 = arith.constant 0 : index
    %c0_2 = arith.constant 0 : index
    %1 = vector.load %arg1[%c0_1, %c0_2] : memref<128x128xf32, #tpu.memory_space<vmem>>, vector<128x128xf32>
    %c0_3 = arith.constant 0 : index
    %c0_4 = arith.constant 0 : index
    %2 = vector.load %arg2[%c0_3, %c0_4] : memref<128x128xf32, #tpu.memory_space<vmem>>, vector<128x128xf32>
    %c0_5 = arith.constant 0 : index
    %c0_6 = arith.constant 0 : index
    %3 = vector.load %arg3[%c0_5, %c0_6] : memref<128x128xf32, #tpu.memory_space<vmem>>, vector<128x128xf32>
    %c0_7 = arith.constant 0 : index
    %c0_8 = arith.constant 0 : index
    %4 = vector.load %arg4[%c0_7, %c0_8] : memref<1x128xf32, #tpu.memory_space<vmem>>, vector<1x128xf32>
    %cst = arith.constant dense<0.000000e+00> : vector<128x128xf32>
    %5 = tpu.matmul %1, %2, %cst {dimension_numbers = #tpu.dot_dimension_numbers<[1], [0], [0], [1], [0, 0, 1, 1], [], []>} : vector<128x128xf32>, vector<128x128xf32>, vector<128x128xf32> -> vector<128x128xf32>
    %cst_9 = arith.constant dense<0.000000e+00> : vector<128x128xf32>
    %6 = tpu.matmul %1, %3, %cst_9 {dimension_numbers = #tpu.dot_dimension_numbers<[1], [0], [0], [1], [0, 0, 1, 1], [], []>} : vector<128x128xf32>, vector<128x128xf32>, vector<128x128xf32> -> vector<128x128xf32>
    %7 = vector.broadcast %4 : vector<1x128xf32> to vector<128x128xf32>
    %8 = arith.addf %6, %7 : vector<128x128xf32>
    %9 = arith.truncf %5 : vector<128x128xf32> to vector<128x128xbf16>
    %cst_10 = arith.constant dense<0.000000e+00> : vector<128x128xf32>
    %10 = tpu.matmul %0, %9, %cst_10 {dimension_numbers = #tpu.dot_dimension_numbers<[1], [0], [0], [1], [0, 0, 1, 1], [], []>} : vector<128x128xbf16>, vector<128x128xbf16>, vector<128x128xf32> -> vector<128x128xf32>
    %11 = arith.addf %10, %8 : vector<128x128xf32>
    %cst_11 = arith.constant 0.000000e+00 : f32
    %12 = vector.broadcast %cst_11 : f32 to vector<128x128xf32>
    %13 = arith.maximumf %11, %12 : vector<128x128xf32>
    %c0_12 = arith.constant 0 : index
    %c0_13 = arith.constant 0 : index
    %14 = vector.load %arg5[%c0_12, %c0_13] : memref<128x128xf32, #tpu.memory_space<vmem>>, vector<128x128xf32>
    %c0_14 = arith.constant 0 : index
    %c0_15 = arith.constant 0 : index
    %15 = vector.load %arg6[%c0_14, %c0_15] : memref<128x128xf32, #tpu.memory_space<vmem>>, vector<128x128xf32>
    %c0_16 = arith.constant 0 : index
    %c0_17 = arith.constant 0 : index
    %16 = vector.load %arg7[%c0_16, %c0_17] : memref<1x128xf32, #tpu.memory_space<vmem>>, vector<1x128xf32>
    %cst_18 = arith.constant dense<0.000000e+00> : vector<128x128xf32>
    %17 = tpu.matmul %13, %14, %cst_18 {dimension_numbers = #tpu.dot_dimension_numbers<[1], [0], [0], [1], [0, 0, 1, 1], [], []>} : vector<128x128xf32>, vector<128x128xf32>, vector<128x128xf32> -> vector<128x128xf32>
    %cst_19 = arith.constant dense<0.000000e+00> : vector<128x128xf32>
    %18 = tpu.matmul %13, %15, %cst_19 {dimension_numbers = #tpu.dot_dimension_numbers<[1], [0], [0], [1], [0, 0, 1, 1], [], []>} : vector<128x128xf32>, vector<128x128xf32>, vector<128x128xf32> -> vector<128x128xf32>
    %19 = vector.broadcast %16 : vector<1x128xf32> to vector<128x128xf32>
    %20 = arith.addf %18, %19 : vector<128x128xf32>
    %21 = arith.truncf %17 : vector<128x128xf32> to vector<128x128xbf16>
    %cst_20 = arith.constant dense<0.000000e+00> : vector<128x128xf32>
    %22 = tpu.matmul %0, %21, %cst_20 {dimension_numbers = #tpu.dot_dimension_numbers<[1], [0], [0], [1], [0, 0, 1, 1], [], []>} : vector<128x128xbf16>, vector<128x128xbf16>, vector<128x128xf32> -> vector<128x128xf32>
    %23 = arith.addf %22, %20 : vector<128x128xf32>
    %c0_21 = arith.constant 0 : index
    %c0_22 = arith.constant 0 : index
    %24 = vector.load %arg8[%c0_21, %c0_22] : memref<128x128xf32, #tpu.memory_space<vmem>>, vector<128x128xf32>
    tpu.vector_store %arg8[%c0_21, %c0_22], %23 {strides = array<i32>} : memref<128x128xf32, #tpu.memory_space<vmem>>, vector<128x128xf32>,
    return
  }
}

</mosaic_0001>

<llo_original>
// kernel: sage_forward.1
$region0: #{sage_forward.1}
  #allocation0 [shape = 'u32[]', space=smem, size = 0x4, offset = 0x4, fixed_abs, tag = 'smem constant byte address 0x4 - core index']
  #allocation1 [shape = 'u32[144,128]{1,0:T(1,128)}', space=vmem, size = 0x12000, scoped, tag = 'internal scratch']
  %s0 = inlined_call_operand.vmem [shape: bf16[128,128], index: 0, kind: input, shape index: {}]
  %s1 = inlined_call_operand.vmem [shape: f32[128,128], index: 1, kind: input, shape index: {}]
  %s2 = inlined_call_operand.vmem [shape: f32[128,128], index: 2, kind: input, shape index: {}]
  %s3 = inlined_call_operand.vmem [shape: f32[128,128], index: 3, kind: input, shape index: {}]
  %s4 = inlined_call_operand.vmem [shape: f32[1,128], index: 4, kind: input, shape index: {}]
  %s5 = inlined_call_operand.vmem [shape: f32[128,128], index: 5, kind: input, shape index: {}]
  %s6 = inlined_call_operand.vmem [shape: f32[128,128], index: 6, kind: input, shape index: {}]
  %s7 = inlined_call_operand.vmem [shape: f32[1,128], index: 7, kind: input, shape index: {}]
  %s8 = inlined_call_operand.vmem [shape: f32[128,128], index: 8, kind: output, shape index: {}]
  %s9 = sld [smem:[#allocation0]]
  $region42: #{sage_forward.1} parent=0
    _
  %s11 = ssub.s32 1, %s9
  %s12 = scalar_select 0, %s11, %s9
  // Predicated region
  $region2: #{sage_forward.1} parent=0 // pred_check
    _
  $region3: #{sage_forward.1} parent=0 // pred_check_branch
    %14 = sbr.rel (0) target = $region5
  $region4: #{sage_forward.1} parent=0 // pred_region
    _
  $region5: #{sage_forward.1} parent=0 // pred_fallthru
    _
  // Predicated region
  $region6: #{sage_forward.1} parent=0 // pred_check
    _
  $region7: #{sage_forward.1} parent=0 // pred_check_branch
    %16 = sbr.rel (0) target = $region9
  $region8: #{sage_forward.1} parent=0 // pred_region
    _
  $region9: #{sage_forward.1} parent=0 // pred_fallthru
    _
  // Predicated region
  $region10: #{sage_forward.1} parent=0 // pred_check
    _
  $region11: #{sage_forward.1} parent=0 // pred_check_branch
    %18 = sbr.rel (0) target = $region13
  $region12: #{sage_forward.1} parent=0 // pred_region
    _
  $region13: #{sage_forward.1} parent=0 // pred_fallthru
    _
  // Predicated region
  $region14: #{sage_forward.1} parent=0 // pred_check
    _
  $region15: #{sage_forward.1} parent=0 // pred_check_branch
    %20 = sbr.rel (0) target = $region17
  $region16: #{sage_forward.1} parent=0 // pred_region
    _
  $region17: #{sage_forward.1} parent=0 // pred_fallthru
    _
  // Predicated region
  $region18: #{sage_forward.1} parent=0 // pred_check
    _
  $region19: #{sage_forward.1} parent=0 // pred_check_branch
    %22 = sbr.rel (0) target = $region21
  $region20: #{sage_forward.1} parent=0 // pred_region
    _
  $region21: #{sage_forward.1} parent=0 // pred_fallthru
    _
  // Predicated region
  $region22: #{sage_forward.1} parent=0 // pred_check
    _
  $region23: #{sage_forward.1} parent=0 // pred_check_branch
    %24 = sbr.rel (0) target = $region25
  $region24: #{sage_forward.1} parent=0 // pred_region
    _
  $region25: #{sage_forward.1} parent=0 // pred_fallthru
    _
  // Predicated region
  $region26: #{sage_forward.1} parent=0 // pred_check
    _
  $region27: #{sage_forward.1} parent=0 // pred_check_branch
    %26 = sbr.rel (0) target = $region29
  $region28: #{sage_forward.1} parent=0 // pred_region
    _
  $region29: #{sage_forward.1} parent=0 // pred_fallthru
    _
  // Predicated region
  $region30: #{sage_forward.1} parent=0 // pred_check
    _
  $region31: #{sage_forward.1} parent=0 // pred_check_branch
    %28 = sbr.rel (0) target = $region33
  $region32: #{sage_forward.1} parent=0 // pred_region
    _
  $region33: #{sage_forward.1} parent=0 // pred_fallthru
    _
  %v30 = vld [vmem:[%s0] sm:$0xf]
  %v31 = vld [vmem:[%s0 + $0x4] sm:$0xf]
  %v32 = vld [vmem:[%s0 + $0x8] sm:$0xf]
  %v33 = vld [vmem:[%s0 + $0xc] sm:$0xf]
  %v34 = vld [vmem:[%s0 + $0x10] sm:$0xf]
  %v35 = vld [vmem:[%s0 + $0x14] sm:$0xf]
  %v36 = vld [vmem:[%s0 + $0x18] sm:$0xf]
  %v37 = vld [vmem:[%s0 + $0x1c] sm:$0xf]
  %v38 = vld [vmem:[%s0 + $0x20] sm:$0xf]
  %v39 = vld [vmem:[%s0 + $0x24] sm:$0xf]
  %v40 = vld [vmem:[%s0 + $0x28] sm:$0xf]
  %v41 = vld [vmem:[%s0 + $0x2c] sm:$0xf]
  %v42 = vld [vmem:[%s0 + $0x30] sm:$0xf]
  %v43 = vld [vmem:[%s0 + $0x34] sm:$0xf]
  %v44 = vld [vmem:[%s0 + $0x38] sm:$0xf]
  %v45 = vld [vmem:[%s0 + $0x3c] sm:$0xf]
  %v46 = vld [vmem:[%s1] sm:$0xff]
  %v47 = vld [vmem:[%s1 + $0x8] sm:$0xff]
  %v48 = vld [vmem:[%s1 + $0x10] sm:$0xff]
  %v49 = vld [vmem:[%s1 + $0x18] sm:$0xff]
  %v50 = vld [vmem:[%s1 + $0x20] sm:$0xff]
  %v51 = vld [vmem:[%s1 + $0x28] sm:$0xff]
  %v52 = vld [vmem:[%s1 + $0x30] sm:$0xff]
  %v53 = vld [vmem:[%s1 + $0x38] sm:$0xff]
  %v54 = vld [vmem:[%s1 + $0x40] sm:$0xff]
  %v55 = vld [vmem:[%s1 + $0x48] sm:$0xff]
  %v56 = vld [vmem:[%s1 + $0x50] sm:$0xff]
  %v57 = vld [vmem:[%s1 + $0x58] sm:$0xff]
  %v58 = vld [vmem:[%s1 + $0x60] sm:$0xff]
  %v59 = vld [vmem:[%s1 + $0x68] sm:$0xff]
  %v60 = vld [vmem:[%s1 + $0x70] sm:$0xff]
  %v61 = vld [vmem:[%s1 + $0x78] sm:$0xff]
  %v62 = vld [vmem:[%s2] sm:$0xff]
  %v63 = vld [vmem:[%s2 + $0x8] sm:$0xff]
  %v64 = vld [vmem:[%s2 + $0x10] sm:$0xff]
  %v65 = vld [vmem:[%s2 + $0x18] sm:$0xff]
  %v66 = vld [vmem:[%s2 + $0x20] sm:$0xff]
  %v67 = vld [vmem:[%s2 + $0x28] sm:$0xff]
  %v68 = vld [vmem:[%s2 + $0x30] sm:$0xff]
  %v69 = vld [vmem:[%s2 + $0x38] sm:$0xff]
  %v70 = vld [vmem:[%s2 + $0x40] sm:$0xff]
  %v71 = vld [vmem:[%s2 + $0x48] sm:$0xff]
  %v72 = vld [vmem:[%s2 + $0x50] sm:$0xff]
  %v73 = vld [vmem:[%s2 + $0x58] sm:$0xff]
  %v74 = vld [vmem:[%s2 + $0x60] sm:$0xff]
  %v75 = vld [vmem:[%s2 + $0x68] sm:$0xff]
  %v76 = vld [vmem:[%s2 + $0x70] sm:$0xff]
  %v77 = vld [vmem:[%s2 + $0x78] sm:$0xff]
  %v78 = vld [vmem:[%s3] sm:$0xff]
  %v79 = vld [vmem:[%s3 + $0x8] sm:$0xff]
  %v80 = vld [vmem:[%s3 + $0x10] sm:$0xff]
  %v81 = vld [vmem:[%s3 + $0x18] sm:$0xff]
  %v82 = vld [vmem:[%s3 + $0x20] sm:$0xff]
  %v83 = vld [vmem:[%s3 + $0x28] sm:$0xff]
  %v84 = vld [vmem:[%s3 + $0x30] sm:$0xff]
  %v85 = vld [vmem:[%s3 + $0x38] sm:$0xff]
  %v86 = vld [vmem:[%s3 + $0x40] sm:$0xff]
  %v87 = vld [vmem:[%s3 + $0x48] sm:$0xff]
  %v88 = vld [vmem:[%s3 + $0x50] sm:$0xff]
  %v89 = vld [vmem:[%s3 + $0x58] sm:$0xff]
  %v90 = vld [vmem:[%s3 + $0x60] sm:$0xff]
  %v91 = vld [vmem:[%s3 + $0x68] sm:$0xff]
  %v92 = vld [vmem:[%s3 + $0x70] sm:$0xff]
  %v93 = vld [vmem:[%s3 + $0x78] sm:$0xff]
  %v94 = vld [vmem:[%s4] sm:$0x1]
  %95 = vmatprep.subr.mxu0 0.0
  %96 = vmatpush1.msra.mxu0 %v62
  %97 = vmatprep.subr.mxu0 0.0
  %98 = vmatpush1.msra.mxu0 %v63
  %99 = vmatprep.subr.mxu0 0.0
  %100 = vmatpush1.msra.mxu0 %v64
  %101 = vmatprep.subr.mxu0 0.0
  %102 = vmatpush1.msra.mxu0 %v65
  %103 = vmatprep.subr.mxu0 0.0
  %104 = vmatpush1.msra.mxu0 %v66
  %105 = vmatprep.subr.mxu0 0.0
  %106 = vmatpush1.msra.mxu0 %v67
  %107 = vmatprep.subr.mxu0 0.0
  %108 = vmatpush1.msra.mxu0 %v68
  %109 = vmatprep.subr.mxu0 0.0
  %110 = vmatpush1.msra.mxu0 %v69
  %111 = vmatprep.subr.mxu0 0.0
  %112 = vmatpush1.msra.mxu0 %v70
  %113 = vmatprep.subr.mxu0 0.0
  %114 = vmatpush1.msra.mxu0 %v71
  %115 = vmatprep.subr.mxu0 0.0
  %116 = vmatpush1.msra.mxu0 %v72
  %117 = vmatprep.subr.mxu0 0.0
  %118 = vmatpush1.msra.mxu0 %v73
  %119 = vmatprep.subr.mxu0 0.0
  %120 = vmatpush1.msra.mxu0 %v74
  %121 = vmatprep.subr.mxu0 0.0
  %122 = vmatpush1.msra.mxu0 %v75
  %123 = vmatprep.subr.mxu0 0.0
  %124 = vmatpush1.msra.mxu0 %v76
  %125 = vmatprep.subr.mxu0 0.0
  %126 = vmatpush1.msra.mxu0 %v77
  %127 = vmatprep.subr.mxu0 0.0
  %128 = vmatpush1.msra.mxu0 0.0
  %129 = vmatprep.subr.mxu0 0.0
  %130 = vmatpush1.msra.mxu0 0.0
  %131 = vmatprep.subr.mxu0 0.0
  %132 = vmatpush1.msra.mxu0 0.0
  %133 = vmatprep.subr.mxu0 0.0
  %134 = vmatpush1.msra.mxu0 0.0
  %135 = vmatprep.subr.mxu0 0.0
  %136 = vmatpush1.msra.mxu0 0.0
  %137 = vmatprep.subr.mxu0 0.0
  %138 = vmatpush1.msra.mxu0 0.0
  %139 = vmatprep.subr.mxu0 0.0
  %140 = vmatpush1.msra.mxu0 0.0
  %141 = vmatprep.subr.mxu0 0.0
  %142 = vmatpush1.msra.mxu0 0.0
  %143 = vmatprep.subr.mxu0 0.0
  %144 = vmatpush1.msra.mxu0 0.0
  %145 = vmatprep.subr.mxu0 0.0
  %146 = vmatpush1.msra.mxu0 0.0
  %147 = vmatprep.subr.mxu0 0.0
  %148 = vmatpush1.msra.mxu0 0.0
  %149 = vmatprep.subr.mxu0 0.0
  %150 = vmatpush1.msra.mxu0 0.0
  %151 = vmatprep.subr.mxu0 0.0
  %152 = vmatpush1.msra.mxu0 0.0
  %153 = vmatprep.subr.mxu0 0.0
  %154 = vmatpush1.msra.mxu0 0.0
  %155 = vmatprep.subr.mxu0 0.0
  %156 = vmatpush1.msra.mxu0 0.0
  %157 = vmatprep.subr.mxu0 0.0
  %158 = vmatpush1.msra.mxu0 0.0
  %159 = vmatprep.mubr.f32.mxu0 0.0
  %160 = vmatmul.mubr.f32.gmra.mrb[0].mxu0 %v46
  %v161 = vpop.f32.mrb[0].mxu0
  %v162 = vadd.f32 0.0, %v161
  %v163 = vpop.f32.mrb[0].mxu0
  %164 = vmatprep.mubr.f32.mxu0 0.0
  %165 = vmatmul.mubr.f32.gmra.mrb[0].mxu0 %v47
  %v166 = vpop.f32.mrb[0].mxu0
  %v167 = vadd.f32 0.0, %v166
  %v168 = vpop.f32.mrb[0].mxu0
  %169 = vmatprep.mubr.f32.mxu0 0.0
  %170 = vmatmul.mubr.f32.gmra.mrb[0].mxu0 %v48
  %v171 = vpop.f32.mrb[0].mxu0
  %v172 = vadd.f32 0.0, %v171
  %v173 = vpop.f32.mrb[0].mxu0
  %174 = vmatprep.mubr.f32.mxu0 0.0
  %175 = vmatmul.mubr.f32.gmra.mrb[0].mxu0 %v49
  %v176 = vpop.f32.mrb[0].mxu0
  %v177 = vadd.f32 0.0, %v176
  %v178 = vpop.f32.mrb[0].mxu0
  %179 = vmatprep.mubr.f32.mxu0 0.0
  %180 = vmatmul.mubr.f32.gmra.mrb[0].mxu0 %v50
  %v181 = vpop.f32.mrb[0].mxu0
  %v182 = vadd.f32 0.0, %v181
  %v183 = vpop.f32.mrb[0].mxu0
  %184 = vmatprep.mubr.f32.mxu0 0.0
  %185 = vmatmul.mubr.f32.gmra.mrb[0].mxu0 %v51
  %v186 = vpop.f32.mrb[0].mxu0
  %v187 = vadd.f32 0.0, %v186
  %v188 = vpop.f32.mrb[0].mxu0
  %189 = vmatprep.mubr.f32.mxu0 0.0
  %190 = vmatmul.mubr.f32.gmra.mrb[0].mxu0 %v52
  %v191 = vpop.f32.mrb[0].mxu0
  %v192 = vadd.f32 0.0, %v191
  %v193 = vpop.f32.mrb[0].mxu0
  %194 = vmatprep.mubr.f32.mxu0 0.0
  %195 = vmatmul.mubr.f32.gmra.mrb[0].mxu0 %v53
  %v196 = vpop.f32.mrb[0].mxu0
  %v197 = vadd.f32 0.0, %v196
  %v198 = vpop.f32.mrb[0].mxu0
  %199 = vmatprep.mubr.f32.mxu0 0.0
  %200 = vmatmul.mubr.f32.gmra.mrb[0].mxu0 %v54
  %v201 = vpop.f32.mrb[0].mxu0
  %v202 = vadd.f32 0.0, %v201
  %v203 = vpop.f32.mrb[0].mxu0
  %204 = vmatprep.mubr.f32.mxu0 0.0
  %205 = vmatmul.mubr.f32.gmra.mrb[0].mxu0 %v55
  %v206 = vpop.f32.mrb[0].mxu0
  %v207 = vadd.f32 0.0, %v206
  %v208 = vpop.f32.mrb[0].mxu0
  %209 = vmatprep.mubr.f32.mxu0 0.0
  %210 = vmatmul.mubr.f32.gmra.mrb[0].mxu0 %v56
  %v211 = vpop.f32.mrb[0].mxu0
  %v212 = vadd.f32 0.0, %v211
  %v213 = vpop.f32.mrb[0].mxu0
  %214 = vmatprep.mubr.f32.mxu0 0.0
  %215 = vmatmul.mubr.f32.gmra.mrb[0].mxu0 %v57
  %v216 = vpop.f32.mrb[0].mxu0
  %v217 = vadd.f32 0.0, %v216
  %v218 = vpop.f32.mrb[0].mxu0
  %219 = vmatprep.mubr.f32.mxu0 0.0
  %220 = vmatmul.mubr.f32.gmra.mrb[0].mxu0 %v58
  %v221 = vpop.f32.mrb[0].mxu0
  %v222 = vadd.f32 0.0, %v221
  %v223 = vpop.f32.mrb[0].mxu0
  %224 = vmatprep.mubr.f32.mxu0 0.0
  %225 = vmatmul.mubr.f32.gmra.mrb[0].mxu0 %v59
  %v226 = vpop.f32.mrb[0].mxu0
  %v227 = vadd.f32 0.0, %v226
  %v228 = vpop.f32.mrb[0].mxu0
  %229 = vmatprep.mubr.f32.mxu0 0.0
  %230 = vmatmul.mubr.f32.gmra.mrb[0].mxu0 %v60
  %v231 = vpop.f32.mrb[0].mxu0
  %v232 = vadd.f32 0.0, %v231
  %v233 = vpop.f32.mrb[0].mxu0
  %234 = vmatprep.mubr.f32.mxu0 0.0
  %235 = vmatmul.mubr.f32.gmra.mrb[0].mxu0 %v61
  %v236 = vpop.f32.mrb[0].mxu0
  %v237 = vadd.f32 0.0, %v236
  %v238 = vpop.f32.mrb[0].mxu0
  %239 = vdwg.mxu0
  %v241 = vlaneseq
  %v242 = vshrl.u32 %v241, 7
  %v243 = vsub.s32 0, %v242
  %v244 = vrot.slane %v94, %v243
  %246 = vmatprep.subr.mxu0 0.0
  %247 = vmatpush1.msra.mxu0 %v78
  %248 = vmatprep.subr.mxu0 0.0
  %249 = vmatpush1.msra.mxu0 %v79
  %250 = vmatprep.subr.mxu0 0.0
  %251 = vmatpush1.msra.mxu0 %v80
  %252 = vmatprep.subr.mxu0 0.0
  %253 = vmatpush1.msra.mxu0 %v81
  %254 = vmatprep.subr.mxu0 0.0
  %255 = vmatpush1.msra.mxu0 %v82
  %256 = vmatprep.subr.mxu0 0.0
  %257 = vmatpush1.msra.mxu0 %v83
  %258 = vmatprep.subr.mxu0 0.0
  %259 = vmatpush1.msra.mxu0 %v84
  %260 = vmatprep.subr.mxu0 0.0
  %261 = vmatpush1.msra.mxu0 %v85
  %262 = vmatprep.subr.mxu0 0.0
  %263 = vmatpush1.msra.mxu0 %v86
  %264 = vmatprep.subr.mxu0 0.0
  %265 = vmatpush1.msra.mxu0 %v87
  %266 = vmatprep.subr.mxu0 0.0
  %267 = vmatpush1.msra.mxu0 %v88
  %268 = vmatprep.subr.mxu0 0.0
  %269 = vmatpush1.msra.mxu0 %v89
  %270 = vmatprep.subr.mxu0 0.0
  %271 = vmatpush1.msra.mxu0 %v90
  %272 = vmatprep.subr.mxu0 0.0
  %273 = vmatpush1.msra.mxu0 %v91
  %274 = vmatprep.subr.mxu0 0.0
  %275 = vmatpush1.msra.mxu0 %v92
  %276 = vmatprep.subr.mxu0 0.0
  %277 = vmatpush1.msra.mxu0 %v93
  %278 = vmatprep.subr.mxu0 0.0
  %279 = vmatpush1.msra.mxu0 0.0
  %280 = vmatprep.subr.mxu0 0.0
  %281 = vmatpush1.msra.mxu0 0.0
  %282 = vmatprep.subr.mxu0 0.0
  %283 = vmatpush1.msra.mxu0 0.0
  %284 = vmatprep.subr.mxu0 0.0
  %285 = vmatpush1.msra.mxu0 0.0
  %286 = vmatprep.subr.mxu0 0.0
  %287 = vmatpush1.msra.mxu0 0.0
  %288 = vmatprep.subr.mxu0 0.0
  %289 = vmatpush1.msra.mxu0 0.0
  %290 = vmatprep.subr.mxu0 0.0
  %291 = vmatpush1.msra.mxu0 0.0
  %292 = vmatprep.subr.mxu0 0.0
  %293 = vmatpush1.msra.mxu0 0.0
  %294 = vmatprep.subr.mxu0 0.0
  %295 = vmatpush1.msra.mxu0 0.0
  %296 = vmatprep.subr.mxu0 0.0
  %297 = vmatpush1.msra.mxu0 0.0
  %298 = vmatprep.subr.mxu0 0.0
  %299 = vmatpush1.msra.mxu0 0.0
  %300 = vmatprep.subr.mxu0 0.0
  %301 = vmatpush1.msra.mxu0 0.0
  %302 = vmatprep.subr.mxu0 0.0
  %303 = vmatpush1.msra.mxu0 0.0
  %304 = vmatprep.subr.mxu0 0.0
  %305 = vmatpush1.msra.mxu0 0.0
  %306 = vmatprep.subr.mxu0 0.0
  %307 = vmatpush1.msra.mxu0 0.0
  %308 = vmatprep.subr.mxu0 0.0
  %309 = vmatpush1.msra.mxu0 0.0
  %310 = vmatprep.mubr.f32.mxu0 0.0
  %311 = vmatmul.mubr.f32.gmra.mrb[0].mxu0 %v46
  %v312 = vpop.f32.mrb[0].mxu0
  %v313 = vadd.f32 %v244, %v312
  %v314 = vpop.f32.mrb[0].mxu0
  %315 = vmatprep.mubr.f32.mxu0 0.0
  %316 = vmatmul.mubr.f32.gmra.mrb[0].mxu0 %v47
  %v317 = vpop.f32.mrb[0].mxu0
  %v318 = vadd.f32 %v244, %v317
  %v319 = vpop.f32.mrb[0].mxu0
  %320 = vmatprep.mubr.f32.mxu0 0.0
  %321 = vmatmul.mubr.f32.gmra.mrb[0].mxu0 %v48
  %v322 = vpop.f32.mrb[0].mxu0
  %v323 = vadd.f32 %v244, %v322
  %v324 = vpop.f32.mrb[0].mxu0
  %325 = vmatprep.mubr.f32.mxu0 0.0
  %326 = vmatmul.mubr.f32.gmra.mrb[0].mxu0 %v49
  %v327 = vpop.f32.mrb[0].mxu0
  %v328 = vadd.f32 %v244, %v327
  %v329 = vpop.f32.mrb[0].mxu0
  %330 = vmatprep.mubr.f32.mxu0 0.0
  %331 = vmatmul.mubr.f32.gmra.mrb[0].mxu0 %v50
  %v332 = vpop.f32.mrb[0].mxu0
  %v333 = vadd.f32 %v244, %v332
  %v334 = vpop.f32.mrb[0].mxu0
  %335 = vmatprep.mubr.f32.mxu0 0.0
  %336 = vmatmul.mubr.f32.gmra.mrb[0].mxu0 %v51
  %v337 = vpop.f32.mrb[0].mxu0
  %v338 = vadd.f32 %v244, %v337
  %v339 = vpop.f32.mrb[0].mxu0
  %340 = vmatprep.mubr.f32.mxu0 0.0
  %341 = vmatmul.mubr.f32.gmra.mrb[0].mxu0 %v52
  %v342 = vpop.f32.mrb[0].mxu0
  %v343 = vadd.f32 %v244, %v342
  %v344 = vpop.f32.mrb[0].mxu0
  %345 = vmatprep.mubr.f32.mxu0 0.0
  %346 = vmatmul.mubr.f32.gmra.mrb[0].mxu0 %v53
  %v347 = vpop.f32.mrb[0].mxu0
  %v348 = vadd.f32 %v244, %v347
  %v349 = vpop.f32.mrb[0].mxu0
  %350 = vmatprep.mubr.f32.mxu0 0.0
  %351 = vmatmul.mubr.f32.gmra.mrb[0].mxu0 %v54
  %v352 = vpop.f32.mrb[0].mxu0
  %v353 = vadd.f32 %v244, %v352
  %v354 = vpop.f32.mrb[0].mxu0
  %355 = vmatprep.mubr.f32.mxu0 0.0
  %356 = vmatmul.mubr.f32.gmra.mrb[0].mxu0 %v55
  %v357 = vpop.f32.mrb[0].mxu0
  %v358 = vadd.f32 %v244, %v357
  %v359 = vpop.f32.mrb[0].mxu0
  %360 = vmatprep.mubr.f32.mxu0 0.0
  %361 = vmatmul.mubr.f32.gmra.mrb[0].mxu0 %v56
  %v362 = vpop.f32.mrb[0].mxu0
  %v363 = vadd.f32 %v244, %v362
  %v364 = vpop.f32.mrb[0].mxu0
  %365 = vmatprep.mubr.f32.mxu0 0.0
  %366 = vmatmul.mubr.f32.gmra.mrb[0].mxu0 %v57
  %v367 = vpop.f32.mrb[0].mxu0
  %v368 = vadd.f32 %v244, %v367
  %v369 = vpop.f32.mrb[0].mxu0
  %370 = vmatprep.mubr.f32.mxu0 0.0
  %371 = vmatmul.mubr.f32.gmra.mrb[0].mxu0 %v58
  %v372 = vpop.f32.mrb[0].mxu0
  %v373 = vadd.f32 %v244, %v372
  %v374 = vpop.f32.mrb[0].mxu0
  %375 = vmatprep.mubr.f32.mxu0 0.0
  %376 = vmatmul.mubr.f32.gmra.mrb[0].mxu0 %v59
  %v377 = vpop.f32.mrb[0].mxu0
  %v378 = vadd.f32 %v244, %v377
  %v379 = vpop.f32.mrb[0].mxu0
  %380 = vmatprep.mubr.f32.mxu0 0.0
  %381 = vmatmul.mubr.f32.gmra.mrb[0].mxu0 %v60
  %v382 = vpop.f32.mrb[0].mxu0
  %v383 = vadd.f32 %v244, %v382
  %v384 = vpop.f32.mrb[0].mxu0
  %385 = vmatprep.mubr.f32.mxu0 0.0
  %386 = vmatmul.mubr.f32.gmra.mrb[0].mxu0 %v61
  %v387 = vpop.f32.mrb[0].mxu0
  %v388 = vadd.f32 %v244, %v387
  %v389 = vpop.f32.mrb[0].mxu0
  %390 = vdwg.mxu0
  %v391 = vpack.c.bf16 %v167, %v162
  %v392 = vpack.c.bf16 %v177, %v172
  %v393 = vpack.c.bf16 %v187, %v182
  %v394 = vpack.c.bf16 %v197, %v192
  %v395 = vpack.c.bf16 %v207, %v202
  %v396 = vpack.c.bf16 %v217, %v212
  %v397 = vpack.c.bf16 %v227, %v222
  %v398 = vpack.c.bf16 %v237, %v232
  %v415 = vunpack.c.l.b16 %v30
  %v416 = vunpack.c.l.b16 %v31
  %v417 = vunpack.c.l.b16 %v32
  %v418 = vunpack.c.l.b16 %v33
  %v419 = vunpack.c.l.b16 %v34
  %v420 = vunpack.c.l.b16 %v35
  %v421 = vunpack.c.l.b16 %v36
  %v422 = vunpack.c.l.b16 %v37
  %v423 = vunpack.c.l.b16 %v38
  %v424 = vunpack.c.l.b16 %v39
  %v425 = vunpack.c.l.b16 %v40
  %v426 = vunpack.c.l.b16 %v41
  %v427 = vunpack.c.l.b16 %v42
  %v428 = vunpack.c.l.b16 %v43
  %v429 = vunpack.c.l.b16 %v44
  %v430 = vunpack.c.l.b16 %v45
  %v431 = vpack.c.b16 %v416, %v415
  %v432 = vpack.c.b16 %v418, %v417
  %v433 = vpack.c.b16 %v420, %v419
  %v434 = vpack.c.b16 %v422, %v421
  %v435 = vpack.c.b16 %v424, %v423
  %v436 = vpack.c.b16 %v426, %v425
  %v437 = vpack.c.b16 %v428, %v427
  %v438 = vpack.c.b16 %v430, %v429
  %447 = vmatprep.subr.bf16.mxu0 0
  %448 = vmatpush1.bf16.msra.mxu0 %v391
  %449 = vmatprep.subr.bf16.mxu0 0
  %450 = vmatpush1.bf16.msra.mxu0 %v392
  %451 = vmatprep.subr.bf16.mxu0 0
  %452 = vmatpush1.bf16.msra.mxu0 %v393
  %453 = vmatprep.subr.bf16.mxu0 0
  %454 = vmatpush1.bf16.msra.mxu0 %v394
  %455 = vmatprep.subr.bf16.mxu0 0
  %456 = vmatpush1.bf16.msra.mxu0 %v395
  %457 = vmatprep.subr.bf16.mxu0 0
  %458 = vmatpush1.bf16.msra.mxu0 %v396
  %459 = vmatprep.subr.bf16.mxu0 0
  %460 = vmatpush1.bf16.msra.mxu0 %v397
  %461 = vmatprep.subr.bf16.mxu0 0
  %462 = vmatpush1.bf16.msra.mxu0 %v398
  %463 = vmatprep.subr.bf16.mxu0 0
  %464 = vmatpush1.bf16.msra.mxu0 0
  %465 = vmatprep.subr.bf16.mxu0 0
  %466 = vmatpush1.bf16.msra.mxu0 0
  %467 = vmatprep.subr.bf16.mxu0 0
  %468 = vmatpush1.bf16.msra.mxu0 0
  %469 = vmatprep.subr.bf16.mxu0 0
  %470 = vmatpush1.bf16.msra.mxu0 0
  %471 = vmatprep.subr.bf16.mxu0 0
  %472 = vmatpush1.bf16.msra.mxu0 0
  %473 = vmatprep.subr.bf16.mxu0 0
  %474 = vmatpush1.bf16.msra.mxu0 0
  %475 = vmatprep.subr.bf16.mxu0 0
  %476 = vmatpush1.bf16.msra.mxu0 0
  %477 = vmatprep.subr.bf16.mxu0 0
  %478 = vmatpush1.bf16.msra.mxu0 0
  %479 = vmatprep.mubr.bf16.mxu0 0
  %480 = vmatmul.mubr.bf16.gmra.mrb[0].mxu0 %v431
  %v481 = vpop.f32.mrb[0].mxu0
  %v482 = vadd.f32 %v313, %v481
  %v483 = vpop.f32.mrb[0].mxu0
  %v484 = vpop.f32.mrb[0].mxu0
  %v485 = vadd.f32 %v318, %v484
  %v486 = vpop.f32.mrb[0].mxu0
  %487 = vmatprep.mubr.bf16.mxu0 0
  %488 = vmatmul.mubr.bf16.gmra.mrb[0].mxu0 %v432
  %v489 = vpop.f32.mrb[0].mxu0
  %v490 = vadd.f32 %v323, %v489
  %v491 = vpop.f32.mrb[0].mxu0
  %v492 = vpop.f32.mrb[0].mxu0
  %v493 = vadd.f32 %v328, %v492
  %v494 = vpop.f32.mrb[0].mxu0
  %495 = vmatprep.mubr.bf16.mxu0 0
  %496 = vmatmul.mubr.bf16.gmra.mrb[0].mxu0 %v433
  %v497 = vpop.f32.mrb[0].mxu0
  %v498 = vadd.f32 %v333, %v497
  %v499 = vpop.f32.mrb[0].mxu0
  %v500 = vpop.f32.mrb[0].mxu0
  %v501 = vadd.f32 %v338, %v500
  %v502 = vpop.f32.mrb[0].mxu0
  %503 = vmatprep.mubr.bf16.mxu0 0
  %504 = vmatmul.mubr.bf16.gmra.mrb[0].mxu0 %v434
  %v505 = vpop.f32.mrb[0].mxu0
  %v506 = vadd.f32 %v343, %v505
  %v507 = vpop.f32.mrb[0].mxu0
  %v508 = vpop.f32.mrb[0].mxu0
  %v509 = vadd.f32 %v348, %v508
  %v510 = vpop.f32.mrb[0].mxu0
  %511 = vmatprep.mubr.bf16.mxu0 0
  %512 = vmatmul.mubr.bf16.gmra.mrb[0].mxu0 %v435
  %v513 = vpop.f32.mrb[0].mxu0
  %v514 = vadd.f32 %v353, %v513
  %v515 = vpop.f32.mrb[0].mxu0
  %v516 = vpop.f32.mrb[0].mxu0
  %v517 = vadd.f32 %v358, %v516
  %v518 = vpop.f32.mrb[0].mxu0
  %519 = vmatprep.mubr.bf16.mxu0 0
  %520 = vmatmul.mubr.bf16.gmra.mrb[0].mxu0 %v436
  %v521 = vpop.f32.mrb[0].mxu0
  %v522 = vadd.f32 %v363, %v521
  %v523 = vpop.f32.mrb[0].mxu0
  %v524 = vpop.f32.mrb[0].mxu0
  %v525 = vadd.f32 %v368, %v524
  %v526 = vpop.f32.mrb[0].mxu0
  %527 = vmatprep.mubr.bf16.mxu0 0
  %528 = vmatmul.mubr.bf16.gmra.mrb[0].mxu0 %v437
  %v529 = vpop.f32.mrb[0].mxu0
  %v530 = vadd.f32 %v373, %v529
  %v531 = vpop.f32.mrb[0].mxu0
  %v532 = vpop.f32.mrb[0].mxu0
  %v533 = vadd.f32 %v378, %v532
  %v534 = vpop.f32.mrb[0].mxu0
  %535 = vmatprep.mubr.bf16.mxu0 0
  %536 = vmatmul.mubr.bf16.gmra.mrb[0].mxu0 %v438
  %v537 = vpop.f32.mrb[0].mxu0
  %v538 = vadd.f32 %v383, %v537
  %v539 = vpop.f32.mrb[0].mxu0
  %v540 = vpop.f32.mrb[0].mxu0
  %v541 = vadd.f32 %v388, %v540
  %v542 = vpop.f32.mrb[0].mxu0
  %543 = vdwg.mxu0
  %v544 = vmax.f32 %v482, 0.0
  %v545 = vmax.f32 %v485, 0.0
  %v546 = vmax.f32 %v490, 0.0
  %v547 = vmax.f32 %v493, 0.0
  %v548 = vmax.f32 %v498, 0.0
  %v549 = vmax.f32 %v501, 0.0
  %v550 = vmax.f32 %v506, 0.0
  %v551 = vmax.f32 %v509, 0.0
  %v552 = vmax.f32 %v514, 0.0
  %v553 = vmax.f32 %v517, 0.0
  %v554 = vmax.f32 %v522, 0.0
  %v555 = vmax.f32 %v525, 0.0
  %v556 = vmax.f32 %v530, 0.0
  %v557 = vmax.f32 %v533, 0.0
  %v558 = vmax.f32 %v538, 0.0
  %v559 = vmax.f32 %v541, 0.0
  %v560 = vld [vmem:[%s5] sm:$0xff]
  %v561 = vld [vmem:[%s5 + $0x8] sm:$0xff]
  %v562 = vld [vmem:[%s5 + $0x10] sm:$0xff]
  %v563 = vld [vmem:[%s5 + $0x18] sm:$0xff]
  %v564 = vld [vmem:[%s5 + $0x20] sm:$0xff]
  %v565 = vld [vmem:[%s5 + $0x28] sm:$0xff]
  %v566 = vld [vmem:[%s5 + $0x30] sm:$0xff]
  %v567 = vld [vmem:[%s5 + $0x38] sm:$0xff]
  %v568 = vld [vmem:[%s5 + $0x40] sm:$0xff]
  %v569 = vld [vmem:[%s5 + $0x48] sm:$0xff]
  %v570 = vld [vmem:[%s5 + $0x50] sm:$0xff]
  %v571 = vld [vmem:[%s5 + $0x58] sm:$0xff]
  %v572 = vld [vmem:[%s5 + $0x60] sm:$0xff]
  %v573 = vld [vmem:[%s5 + $0x68] sm:$0xff]
  %v574 = vld [vmem:[%s5 + $0x70] sm:$0xff]
  %v575 = vld [vmem:[%s5 + $0x78] sm:$0xff]
  %v576 = vld [vmem:[%s6] sm:$0xff]
  %v577 = vld [vmem:[%s6 + $0x8] sm:$0xff]
  %v578 = vld [vmem:[%s6 + $0x10] sm:$0xff]
  %v579 = vld [vmem:[%s6 + $0x18] sm:$0xff]
  %v580 = vld [vmem:[%s6 + $0x20] sm:$0xff]
  %v581 = vld [vmem:[%s6 + $0x28] sm:$0xff]
  %v582 = vld [vmem:[%s6 + $0x30] sm:$0xff]
  %v583 = vld [vmem:[%s6 + $0x38] sm:$0xff]
  %v584 = vld [vmem:[%s6 + $0x40] sm:$0xff]
  %v585 = vld [vmem:[%s6 + $0x48] sm:$0xff]
  %v586 = vld [vmem:[%s6 + $0x50] sm:$0xff]
  %v587 = vld [vmem:[%s6 + $0x58] sm:$0xff]
  %v588 = vld [vmem:[%s6 + $0x60] sm:$0xff]
  %v589 = vld [vmem:[%s6 + $0x68] sm:$0xff]
  %v590 = vld [vmem:[%s6 + $0x70] sm:$0xff]
  %v591 = vld [vmem:[%s6 + $0x78] sm:$0xff]
  %v592 = vld [vmem:[%s7] sm:$0x1]
  %593 = vmatprep.subr.mxu0 0.0
  %594 = vmatpush1.msra.mxu0 %v560
  %595 = vmatprep.subr.mxu0 0.0
  %596 = vmatpush1.msra.mxu0 %v561
  %597 = vmatprep.subr.mxu0 0.0
  %598 = vmatpush1.msra.mxu0 %v562
  %599 = vmatprep.subr.mxu0 0.0
  %600 = vmatpush1.msra.mxu0 %v563
  %601 = vmatprep.subr.mxu0 0.0
  %602 = vmatpush1.msra.mxu0 %v564
  %603 = vmatprep.subr.mxu0 0.0
  %604 = vmatpush1.msra.mxu0 %v565
  %605 = vmatprep.subr.mxu0 0.0
  %606 = vmatpush1.msra.mxu0 %v566
  %607 = vmatprep.subr.mxu0 0.0
  %608 = vmatpush1.msra.mxu0 %v567
  %609 = vmatprep.subr.mxu0 0.0
  %610 = vmatpush1.msra.mxu0 %v568
  %611 = vmatprep.subr.mxu0 0.0
  %612 = vmatpush1.msra.mxu0 %v569
  %613 = vmatprep.subr.mxu0 0.0
  %614 = vmatpush1.msra.mxu0 %v570
  %615 = vmatprep.subr.mxu0 0.0
  %616 = vmatpush1.msra.mxu0 %v571
  %617 = vmatprep.subr.mxu0 0.0
  %618 = vmatpush1.msra.mxu0 %v572
  %619 = vmatprep.subr.mxu0 0.0
  %620 = vmatpush1.msra.mxu0 %v573
  %621 = vmatprep.subr.mxu0 0.0
  %622 = vmatpush1.msra.mxu0 %v574
  %623 = vmatprep.subr.mxu0 0.0
  %624 = vmatpush1.msra.mxu0 %v575
  %625 = vmatprep.subr.mxu0 0.0
  %626 = vmatpush1.msra.mxu0 0.0
  %627 = vmatprep.subr.mxu0 0.0
  %628 = vmatpush1.msra.mxu0 0.0
  %629 = vmatprep.subr.mxu0 0.0
  %630 = vmatpush1.msra.mxu0 0.0
  %631 = vmatprep.subr.mxu0 0.0
  %632 = vmatpush1.msra.mxu0 0.0
  %633 = vmatprep.subr.mxu0 0.0
  %634 = vmatpush1.msra.mxu0 0.0
  %635 = vmatprep.subr.mxu0 0.0
  %636 = vmatpush1.msra.mxu0 0.0
  %637 = vmatprep.subr.mxu0 0.0
  %638 = vmatpush1.msra.mxu0 0.0
  %639 = vmatprep.subr.mxu0 0.0
  %640 = vmatpush1.msra.mxu0 0.0
  %641 = vmatprep.subr.mxu0 0.0
  %642 = vmatpush1.msra.mxu0 0.0
  %643 = vmatprep.subr.mxu0 0.0
  %644 = vmatpush1.msra.mxu0 0.0
  %645 = vmatprep.subr.mxu0 0.0
  %646 = vmatpush1.msra.mxu0 0.0
  %647 = vmatprep.subr.mxu0 0.0
  %648 = vmatpush1.msra.mxu0 0.0
  %649 = vmatprep.subr.mxu0 0.0
  %650 = vmatpush1.msra.mxu0 0.0
  %651 = vmatprep.subr.mxu0 0.0
  %652 = vmatpush1.msra.mxu0 0.0
  %653 = vmatprep.subr.mxu0 0.0
  %654 = vmatpush1.msra.mxu0 0.0
  %655 = vmatprep.subr.mxu0 0.0
  %656 = vmatpush1.msra.mxu0 0.0
  %657 = vmatprep.mubr.f32.mxu0 0.0
  %658 = vmatmul.mubr.f32.gmra.mrb[0].mxu0 %v544
  %v659 = vpop.f32.mrb[0].mxu0
  %v660 = vadd.f32 0.0, %v659
  %v661 = vpop.f32.mrb[0].mxu0
  %662 = vmatprep.mubr.f32.mxu0 0.0
  %663 = vmatmul.mubr.f32.gmra.mrb[0].mxu0 %v545
  %v664 = vpop.f32.mrb[0].mxu0
  %v665 = vadd.f32 0.0, %v664
  %v666 = vpop.f32.mrb[0].mxu0
  %667 = vmatprep.mubr.f32.mxu0 0.0
  %668 = vmatmul.mubr.f32.gmra.mrb[0].mxu0 %v546
  %v669 = vpop.f32.mrb[0].mxu0
  %v670 = vadd.f32 0.0, %v669
  %v671 = vpop.f32.mrb[0].mxu0
  %672 = vmatprep.mubr.f32.mxu0 0.0
  %673 = vmatmul.mubr.f32.gmra.mrb[0].mxu0 %v547
  %v674 = vpop.f32.mrb[0].mxu0
  %v675 = vadd.f32 0.0, %v674
  %v676 = vpop.f32.mrb[0].mxu0
  %677 = vmatprep.mubr.f32.mxu0 0.0
  %678 = vmatmul.mubr.f32.gmra.mrb[0].mxu0 %v548
  %v679 = vpop.f32.mrb[0].mxu0
  %v680 = vadd.f32 0.0, %v679
  %v681 = vpop.f32.mrb[0].mxu0
  %682 = vmatprep.mubr.f32.mxu0 0.0
  %683 = vmatmul.mubr.f32.gmra.mrb[0].mxu0 %v549
  %v684 = vpop.f32.mrb[0].mxu0
  %v685 = vadd.f32 0.0, %v684
  %v686 = vpop.f32.mrb[0].mxu0
  %687 = vmatprep.mubr.f32.mxu0 0.0
  %688 = vmatmul.mubr.f32.gmra.mrb[0].mxu0 %v550
  %v689 = vpop.f32.mrb[0].mxu0
  %v690 = vadd.f32 0.0, %v689
  %v691 = vpop.f32.mrb[0].mxu0
  %692 = vmatprep.mubr.f32.mxu0 0.0
  %693 = vmatmul.mubr.f32.gmra.mrb[0].mxu0 %v551
  %v694 = vpop.f32.mrb[0].mxu0
  %v695 = vadd.f32 0.0, %v694
  %v696 = vpop.f32.mrb[0].mxu0
  %697 = vmatprep.mubr.f32.mxu0 0.0
  %698 = vmatmul.mubr.f32.gmra.mrb[0].mxu0 %v552
  %v699 = vpop.f32.mrb[0].mxu0
  %v700 = vadd.f32 0.0, %v699
  %v701 = vpop.f32.mrb[0].mxu0
  %702 = vmatprep.mubr.f32.mxu0 0.0
  %703 = vmatmul.mubr.f32.gmra.mrb[0].mxu0 %v553
  %v704 = vpop.f32.mrb[0].mxu0
  %v705 = vadd.f32 0.0, %v704
  %v706 = vpop.f32.mrb[0].mxu0
  %707 = vmatprep.mubr.f32.mxu0 0.0
  %708 = vmatmul.mubr.f32.gmra.mrb[0].mxu0 %v554
  %v709 = vpop.f32.mrb[0].mxu0
  %v710 = vadd.f32 0.0, %v709
  %v711 = vpop.f32.mrb[0].mxu0
  %712 = vmatprep.mubr.f32.mxu0 0.0
  %713 = vmatmul.mubr.f32.gmra.mrb[0].mxu0 %v555
  %v714 = vpop.f32.mrb[0].mxu0
  %v715 = vadd.f32 0.0, %v714
  %v716 = vpop.f32.mrb[0].mxu0
  %717 = vmatprep.mubr.f32.mxu0 0.0
  %718 = vmatmul.mubr.f32.gmra.mrb[0].mxu0 %v556
  %v719 = vpop.f32.mrb[0].mxu0
  %v720 = vadd.f32 0.0, %v719
  %v721 = vpop.f32.mrb[0].mxu0
  %722 = vmatprep.mubr.f32.mxu0 0.0
  %723 = vmatmul.mubr.f32.gmra.mrb[0].mxu0 %v557
  %v724 = vpop.f32.mrb[0].mxu0
  %v725 = vadd.f32 0.0, %v724
  %v726 = vpop.f32.mrb[0].mxu0
  %727 = vmatprep.mubr.f32.mxu0 0.0
  %728 = vmatmul.mubr.f32.gmra.mrb[0].mxu0 %v558
  %v729 = vpop.f32.mrb[0].mxu0
  %v730 = vadd.f32 0.0, %v729
  %v731 = vpop.f32.mrb[0].mxu0
  %732 = vmatprep.mubr.f32.mxu0 0.0
  %733 = vmatmul.mubr.f32.gmra.mrb[0].mxu0 %v559
  %v734 = vpop.f32.mrb[0].mxu0
  %v735 = vadd.f32 0.0, %v734
  %v736 = vpop.f32.mrb[0].mxu0
  %737 = vdwg.mxu0
  %v739 = vlaneseq
  %v740 = vshrl.u32 %v739, 7
  %v741 = vsub.s32 0, %v740
  %v742 = vrot.slane %v592, %v741
  %744 = vmatprep.subr.mxu0 0.0
  %745 = vmatpush1.msra.mxu0 %v576
  %746 = vmatprep.subr.mxu0 0.0
  %747 = vmatpush1.msra.mxu0 %v577
  %748 = vmatprep.subr.mxu0 0.0
  %749 = vmatpush1.msra.mxu0 %v578
  %750 = vmatprep.subr.mxu0 0.0
  %751 = vmatpush1.msra.mxu0 %v579
  %752 = vmatprep.subr.mxu0 0.0
  %753 = vmatpush1.msra.mxu0 %v580
  %754 = vmatprep.subr.mxu0 0.0
  %755 = vmatpush1.msra.mxu0 %v581
  %756 = vmatprep.subr.mxu0 0.0
  %757 = vmatpush1.msra.mxu0 %v582
  %758 = vmatprep.subr.mxu0 0.0
  %759 = vmatpush1.msra.mxu0 %v583
  %760 = vmatprep.subr.mxu0 0.0
  %761 = vmatpush1.msra.mxu0 %v584
  %762 = vmatprep.subr.mxu0 0.0
  %763 = vmatpush1.msra.mxu0 %v585
  %764 = vmatprep.subr.mxu0 0.0
  %765 = vmatpush1.msra.mxu0 %v586
  %766 = vmatprep.subr.mxu0 0.0
  %767 = vmatpush1.msra.mxu0 %v587
  %768 = vmatprep.subr.mxu0 0.0
  %769 = vmatpush1.msra.mxu0 %v588
  %770 = vmatprep.subr.mxu0 0.0
  %771 = vmatpush1.msra.mxu0 %v589
  %772 = vmatprep.subr.mxu0 0.0
  %773 = vmatpush1.msra.mxu0 %v590
  %774 = vmatprep.subr.mxu0 0.0
  %775 = vmatpush1.msra.mxu0 %v591
  %776 = vmatprep.subr.mxu0 0.0
  %777 = vmatpush1.msra.mxu0 0.0
  %778 = vmatprep.subr.mxu0 0.0
  %779 = vmatpush1.msra.mxu0 0.0
  %780 = vmatprep.subr.mxu0 0.0
  %781 = vmatpush1.msra.mxu0 0.0
  %782 = vmatprep.subr.mxu0 0.0
  %783 = vmatpush1.msra.mxu0 0.0
  %784 = vmatprep.subr.mxu0 0.0
  %785 = vmatpush1.msra.mxu0 0.0
  %786 = vmatprep.subr.mxu0 0.0
  %787 = vmatpush1.msra.mxu0 0.0
  %788 = vmatprep.subr.mxu0 0.0
  %789 = vmatpush1.msra.mxu0 0.0
  %790 = vmatprep.subr.mxu0 0.0
  %791 = vmatpush1.msra.mxu0 0.0
  %792 = vmatprep.subr.mxu0 0.0
  %793 = vmatpush1.msra.mxu0 0.0
  %794 = vmatprep.subr.mxu0 0.0
  %795 = vmatpush1.msra.mxu0 0.0
  %796 = vmatprep.subr.mxu0 0.0
  %797 = vmatpush1.msra.mxu0 0.0
  %798 = vmatprep.subr.mxu0 0.0
  %799 = vmatpush1.msra.mxu0 0.0
  %800 = vmatprep.subr.mxu0 0.0
  %801 = vmatpush1.msra.mxu0 0.0
  %802 = vmatprep.subr.mxu0 0.0
  %803 = vmatpush1.msra.mxu0 0.0
  %804 = vmatprep.subr.mxu0 0.0
  %805 = vmatpush1.msra.mxu0 0.0
  %806 = vmatprep.subr.mxu0 0.0
  %807 = vmatpush1.msra.mxu0 0.0
  %808 = vmatprep.mubr.f32.mxu0 0.0
  %809 = vmatmul.mubr.f32.gmra.mrb[0].mxu0 %v544
  %v810 = vpop.f32.mrb[0].mxu0
  %v811 = vadd.f32 %v742, %v810
  %v812 = vpop.f32.mrb[0].mxu0
  %813 = vmatprep.mubr.f32.mxu0 0.0
  %814 = vmatmul.mubr.f32.gmra.mrb[0].mxu0 %v545
  %v815 = vpop.f32.mrb[0].mxu0
  %v816 = vadd.f32 %v742, %v815
  %v817 = vpop.f32.mrb[0].mxu0
  %818 = vmatprep.mubr.f32.mxu0 0.0
  %819 = vmatmul.mubr.f32.gmra.mrb[0].mxu0 %v546
  %v820 = vpop.f32.mrb[0].mxu0
  %v821 = vadd.f32 %v742, %v820
  %v822 = vpop.f32.mrb[0].mxu0
  %823 = vmatprep.mubr.f32.mxu0 0.0
  %824 = vmatmul.mubr.f32.gmra.mrb[0].mxu0 %v547
  %v825 = vpop.f32.mrb[0].mxu0
  %v826 = vadd.f32 %v742, %v825
  %v827 = vpop.f32.mrb[0].mxu0
  %828 = vmatprep.mubr.f32.mxu0 0.0
  %829 = vmatmul.mubr.f32.gmra.mrb[0].mxu0 %v548
  %v830 = vpop.f32.mrb[0].mxu0
  %v831 = vadd.f32 %v742, %v830
  %v832 = vpop.f32.mrb[0].mxu0
  %833 = vmatprep.mubr.f32.mxu0 0.0
  %834 = vmatmul.mubr.f32.gmra.mrb[0].mxu0 %v549
  %v835 = vpop.f32.mrb[0].mxu0
  %v836 = vadd.f32 %v742, %v835
  %v837 = vpop.f32.mrb[0].mxu0
  %838 = vmatprep.mubr.f32.mxu0 0.0
  %839 = vmatmul.mubr.f32.gmra.mrb[0].mxu0 %v550
  %v840 = vpop.f32.mrb[0].mxu0
  %v841 = vadd.f32 %v742, %v840
  %v842 = vpop.f32.mrb[0].mxu0
  %843 = vmatprep.mubr.f32.mxu0 0.0
  %844 = vmatmul.mubr.f32.gmra.mrb[0].mxu0 %v551
  %v845 = vpop.f32.mrb[0].mxu0
  %v846 = vadd.f32 %v742, %v845
  %v847 = vpop.f32.mrb[0].mxu0
  %848 = vmatprep.mubr.f32.mxu0 0.0
  %849 = vmatmul.mubr.f32.gmra.mrb[0].mxu0 %v552
  %v850 = vpop.f32.mrb[0].mxu0
  %v851 = vadd.f32 %v742, %v850
  %v852 = vpop.f32.mrb[0].mxu0
  %853 = vmatprep.mubr.f32.mxu0 0.0
  %854 = vmatmul.mubr.f32.gmra.mrb[0].mxu0 %v553
  %v855 = vpop.f32.mrb[0].mxu0
  %v856 = vadd.f32 %v742, %v855
  %v857 = vpop.f32.mrb[0].mxu0
  %858 = vmatprep.mubr.f32.mxu0 0.0
  %859 = vmatmul.mubr.f32.gmra.mrb[0].mxu0 %v554
  %v860 = vpop.f32.mrb[0].mxu0
  %v861 = vadd.f32 %v742, %v860
  %v862 = vpop.f32.mrb[0].mxu0
  %863 = vmatprep.mubr.f32.mxu0 0.0
  %864 = vmatmul.mubr.f32.gmra.mrb[0].mxu0 %v555
  %v865 = vpop.f32.mrb[0].mxu0
  %v866 = vadd.f32 %v742, %v865
  %v867 = vpop.f32.mrb[0].mxu0
  %868 = vmatprep.mubr.f32.mxu0 0.0
  %869 = vmatmul.mubr.f32.gmra.mrb[0].mxu0 %v556
  %v870 = vpop.f32.mrb[0].mxu0
  %v871 = vadd.f32 %v742, %v870
  %v872 = vpop.f32.mrb[0].mxu0
  %873 = vmatprep.mubr.f32.mxu0 0.0
  %874 = vmatmul.mubr.f32.gmra.mrb[0].mxu0 %v557
  %v875 = vpop.f32.mrb[0].mxu0
  %v876 = vadd.f32 %v742, %v875
  %v877 = vpop.f32.mrb[0].mxu0
  %878 = vmatprep.mubr.f32.mxu0 0.0
  %879 = vmatmul.mubr.f32.gmra.mrb[0].mxu0 %v558
  %v880 = vpop.f32.mrb[0].mxu0
  %v881 = vadd.f32 %v742, %v880
  %v882 = vpop.f32.mrb[0].mxu0
  %883 = vmatprep.mubr.f32.mxu0 0.0
  %884 = vmatmul.mubr.f32.gmra.mrb[0].mxu0 %v559
  %v885 = vpop.f32.mrb[0].mxu0
  %v886 = vadd.f32 %v742, %v885
  %v887 = vpop.f32.mrb[0].mxu0
  %888 = vdwg.mxu0
  %v889 = vpack.c.bf16 %v665, %v660
  %v890 = vpack.c.bf16 %v675, %v670
  %v891 = vpack.c.bf16 %v685, %v680
  %v892 = vpack.c.bf16 %v695, %v690
  %v893 = vpack.c.bf16 %v705, %v700
  %v894 = vpack.c.bf16 %v715, %v710
  %v895 = vpack.c.bf16 %v725, %v720
  %v896 = vpack.c.bf16 %v735, %v730
  %897 = vmatprep.subr.bf16.mxu0 0
  %898 = vmatpush1.bf16.msra.mxu0 %v889
  %899 = vmatprep.subr.bf16.mxu0 0
  %900 = vmatpush1.bf16.msra.mxu0 %v890
  %901 = vmatprep.subr.bf16.mxu0 0
  %902 = vmatpush1.bf16.msra.mxu0 %v891
  %903 = vmatprep.subr.bf16.mxu0 0
  %904 = vmatpush1.bf16.msra.mxu0 %v892
  %905 = vmatprep.subr.bf16.mxu0 0
  %906 = vmatpush1.bf16.msra.mxu0 %v893
  %907 = vmatprep.subr.bf16.mxu0 0
  %908 = vmatpush1.bf16.msra.mxu0 %v894
  %909 = vmatprep.subr.bf16.mxu0 0
  %910 = vmatpush1.bf16.msra.mxu0 %v895
  %911 = vmatprep.subr.bf16.mxu0 0
  %912 = vmatpush1.bf16.msra.mxu0 %v896
  %913 = vmatprep.subr.bf16.mxu0 0
  %914 = vmatpush1.bf16.msra.mxu0 0
  %915 = vmatprep.subr.bf16.mxu0 0
  %916 = vmatpush1.bf16.msra.mxu0 0
  %917 = vmatprep.subr.bf16.mxu0 0
  %918 = vmatpush1.bf16.msra.mxu0 0
  %919 = vmatprep.subr.bf16.mxu0 0
  %920 = vmatpush1.bf16.msra.mxu0 0
  %921 = vmatprep.subr.bf16.mxu0 0
  %922 = vmatpush1.bf16.msra.mxu0 0
  %923 = vmatprep.subr.bf16.mxu0 0
  %924 = vmatpush1.bf16.msra.mxu0 0
  %925 = vmatprep.subr.bf16.mxu0 0
  %926 = vmatpush1.bf16.msra.mxu0 0
  %927 = vmatprep.subr.bf16.mxu0 0
  %928 = vmatpush1.bf16.msra.mxu0 0
  %929 = vmatprep.mubr.bf16.mxu0 0
  %930 = vmatmul.mubr.bf16.gmra.mrb[0].mxu0 %v431
  %v931 = vpop.f32.mrb[0].mxu0
  %v932 = vadd.f32 %v811, %v931
  %v933 = vpop.f32.mrb[0].mxu0
  %v934 = vpop.f32.mrb[0].mxu0
  %v935 = vadd.f32 %v816, %v934
  %v936 = vpop.f32.mrb[0].mxu0
  %937 = vmatprep.mubr.bf16.mxu0 0
  %938 = vmatmul.mubr.bf16.gmra.mrb[0].mxu0 %v432
  %v939 = vpop.f32.mrb[0].mxu0
  %v940 = vadd.f32 %v821, %v939
  %v941 = vpop.f32.mrb[0].mxu0
  %v942 = vpop.f32.mrb[0].mxu0
  %v943 = vadd.f32 %v826, %v942
  %v944 = vpop.f32.mrb[0].mxu0
  %945 = vmatprep.mubr.bf16.mxu0 0
  %946 = vmatmul.mubr.bf16.gmra.mrb[0].mxu0 %v433
  %v947 = vpop.f32.mrb[0].mxu0
  %v948 = vadd.f32 %v831, %v947
  %v949 = vpop.f32.mrb[0].mxu0
  %v950 = vpop.f32.mrb[0].mxu0
  %v951 = vadd.f32 %v836, %v950
  %v952 = vpop.f32.mrb[0].mxu0
  %953 = vmatprep.mubr.bf16.mxu0 0
  %954 = vmatmul.mubr.bf16.gmra.mrb[0].mxu0 %v434
  %v955 = vpop.f32.mrb[0].mxu0
  %v956 = vadd.f32 %v841, %v955
  %v957 = vpop.f32.mrb[0].mxu0
  %v958 = vpop.f32.mrb[0].mxu0
  %v959 = vadd.f32 %v846, %v958
  %v960 = vpop.f32.mrb[0].mxu0
  %961 = vmatprep.mubr.bf16.mxu0 0
  %962 = vmatmul.mubr.bf16.gmra.mrb[0].mxu0 %v435
  %v963 = vpop.f32.mrb[0].mxu0
  %v964 = vadd.f32 %v851, %v963
  %v965 = vpop.f32.mrb[0].mxu0
  %v966 = vpop.f32.mrb[0].mxu0
  %v967 = vadd.f32 %v856, %v966
  %v968 = vpop.f32.mrb[0].mxu0
  %969 = vmatprep.mubr.bf16.mxu0 0
  %970 = vmatmul.mubr.bf16.gmra.mrb[0].mxu0 %v436
  %v971 = vpop.f32.mrb[0].mxu0
  %v972 = vadd.f32 %v861, %v971
  %v973 = vpop.f32.mrb[0].mxu0
  %v974 = vpop.f32.mrb[0].mxu0
  %v975 = vadd.f32 %v866, %v974
  %v976 = vpop.f32.mrb[0].mxu0
  %977 = vmatprep.mubr.bf16.mxu0 0
  %978 = vmatmul.mubr.bf16.gmra.mrb[0].mxu0 %v437
  %v979 = vpop.f32.mrb[0].mxu0
  %v980 = vadd.f32 %v871, %v979
  %v981 = vpop.f32.mrb[0].mxu0
  %v982 = vpop.f32.mrb[0].mxu0
  %v983 = vadd.f32 %v876, %v982
  %v984 = vpop.f32.mrb[0].mxu0
  %985 = vmatprep.mubr.bf16.mxu0 0
  %986 = vmatmul.mubr.bf16.gmra.mrb[0].mxu0 %v438
  %v987 = vpop.f32.mrb[0].mxu0
  %v988 = vadd.f32 %v881, %v987
  %v989 = vpop.f32.mrb[0].mxu0
  %v990 = vpop.f32.mrb[0].mxu0
  %v991 = vadd.f32 %v886, %v990
  %v992 = vpop.f32.mrb[0].mxu0
  %993 = vdwg.mxu0
  %994 = vst [vmem:[%s8] sm:$0xff] %v932
  %995 = vst [vmem:[%s8 + $0x8] sm:$0xff] %v935
  %996 = vst [vmem:[%s8 + $0x10] sm:$0xff] %v940
  %997 = vst [vmem:[%s8 + $0x18] sm:$0xff] %v943
  %998 = vst [vmem:[%s8 + $0x20] sm:$0xff] %v948
  %999 = vst [vmem:[%s8 + $0x28] sm:$0xff] %v951
  %1000 = vst [vmem:[%s8 + $0x30] sm:$0xff] %v956
  %1001 = vst [vmem:[%s8 + $0x38] sm:$0xff] %v959
  %1002 = vst [vmem:[%s8 + $0x40] sm:$0xff] %v964
  %1003 = vst [vmem:[%s8 + $0x48] sm:$0xff] %v967
  %1004 = vst [vmem:[%s8 + $0x50] sm:$0xff] %v972
  %1005 = vst [vmem:[%s8 + $0x58] sm:$0xff] %v975
  %1006 = vst [vmem:[%s8 + $0x60] sm:$0xff] %v980
  %1007 = vst [vmem:[%s8 + $0x68] sm:$0xff] %v983
  %1008 = vst [vmem:[%s8 + $0x70] sm:$0xff] %v988
  %1009 = vst [vmem:[%s8 + $0x78] sm:$0xff] %v991
  // Predicated region
  $region34: #{sage_forward.1} parent=0 // pred_check
    _
  $region35: #{sage_forward.1} parent=0 // pred_check_branch
    %1011 = sbr.rel (0) target = $region37
  $region36: #{sage_forward.1} parent=0 // pred_region
    _
  $region37: #{sage_forward.1} parent=0 // pred_fallthru
    _
  // Predicated region
  $region38: #{sage_forward.1} parent=0 // pred_check
    _
  $region39: #{sage_forward.1} parent=0 // pred_check_branch
    %1013 = sbr.rel (0) target = $region41
  $region40: #{sage_forward.1} parent=0 // pred_region
    _
  $region41: #{sage_forward.1} parent=0 // pred_fallthru
    _

</llo_original>
